<compile_context>
chip_gen: v7x
topology: tpu7x:2x2x1
jax: 0.10.0
libtpu: 0.0.40
codegen_flags: <defaults>
</compile_context>

<pallas_src>
import jax
import jax.numpy as jnp
from jax.experimental import pallas as pl
from jax.experimental.pallas import tpu as pltpu


def _round_up(n, m):
    return ((n + m - 1) // m) * m


def _dpp_model_kernel(x_ref, w1_ref, b1_ref, w2_ref, b2_ref, o_ref):
    # In-kernel bf16 cast of the streamed x tile (VPU work, hides under MXU).
    x = x_ref[...].astype(jnp.bfloat16)
    # dpp_layer (Linear): bf16 MXU matmul, f32 accumulation.
    h = jnp.dot(x, w1_ref[...], preferred_element_type=jnp.float32)
    # bias + ReLU in f32 on the VPU.
    h = jnp.maximum(h + b1_ref[...], 0.0)
    # fc_out: cast activation back to bf16 for the MXU, f32 accumulation.
    out = jnp.dot(h.astype(jnp.bfloat16), w2_ref[...],
                  preferred_element_type=jnp.float32)
    # Unpadded f32 store (masked vst for F_out<128, but only real bytes move).
    o_ref[...] = (out + b2_ref[...]).astype(o_ref.dtype)


def dpp_model_forward(x, w1, b1, w2, b2, *, block_b=512):
    """relu(x @ w1 + b1) @ w2 + b2 fused in one Pallas TPU kernel.

    x:  (B, F_in)   float32
    w1: (F_in, H)   float32   (dpp_layer weight, transposed vs torch layout)
    b1: (1, H)      float32
    w2: (H, F_out)  float32   (fc_out weight, transposed vs torch layout)
    b2: (1, F_out)  float32
    """
    B, F_in = x.shape
    H = w1.shape[1]
    F_out = w2.shape[1]

    f32 = jnp.float32
    bf16 = jnp.bfloat16
    F32B, BF16B = 4, 2

    # ---- Batch tile selection -------------------------------------------
    # Balanced split: at least 2 tiles when B allows (feeds both v7x TCs),
    # tile size a multiple of 8 sublanes, and sized to a VMEM budget that
    # counts double-buffering of both streamed and resident operands.
    n_tiles = max(pl.cdiv(B, block_b), 2 if B > 8 else 1)
    tb = _round_up(pl.cdiv(B, n_tiles), 8)
    tb = min(tb, _round_up(B, 8))

    vmem_limit = 32 * 1024 * 1024        # explicit scoped-VMEM limit (safe on v5e/v6e/v7x)
    vmem_budget = 24 * 1024 * 1024       # tiler budget with headroom under the limit

    # Resident operands are still double-buffered by the pipeline (2x).
    resident = 2 * ((F_in * H + H * F_out) * BF16B + (H + F_out) * F32B)

    def _tile_bytes(t):
        streamed = 2 * t * F_in * F32B + 2 * t * F_out * F32B   # x in, out
        interm = t * (F_in * BF16B + H * (F32B + BF16B) + F_out * F32B)
        return streamed + interm

    while tb > 8 and resident + _tile_bytes(tb) > vmem_budget:
        tb = max(8, _round_up(tb // 2, 8))

    grid = (pl.cdiv(B, tb),)

    # One-time, tiny wrapper casts of the resident params (weights -> bf16
    # for the MXU, biases stay f32 for the VPU epilogue). No padding: blocks
    # equal the full array dims so the (8,128) rule does not apply, and the
    # kernel is HBM-bound so MXU fill-width is not the binding slot.
    w1_k = w1.astype(bf16)
    w2_k = w2.astype(bf16)
    b1_k = b1.astype(f32)
    b2_k = b2.astype(f32)

    out = pl.pallas_call(
        _dpp_model_kernel,
        out_shape=jax.ShapeDtypeStruct((B, F_out), f32),
        grid_spec=pltpu.PrefetchScalarGridSpec(
            num_scalar_prefetch=0,
            grid=grid,
            in_specs=[
                pl.BlockSpec((tb, F_in), lambda i: (i, 0)),     # x: streamed, unpadded f32
                pl.BlockSpec((F_in, H), lambda i: (0, 0)),      # w1: resident bf16
                pl.BlockSpec((1, H), lambda i: (0, 0)),         # b1: resident f32
                pl.BlockSpec((H, F_out), lambda i: (0, 0)),     # w2: resident bf16
                pl.BlockSpec((1, F_out), lambda i: (0, 0)),     # b2: resident f32
            ],
            out_specs=pl.BlockSpec((tb, F_out), lambda i: (i, 0)),
        ),
        compiler_params=pltpu.CompilerParams(
            dimension_semantics=("parallel",),   # shard batch tiles across TCs (v7x)
            vmem_limit_bytes=vmem_limit,
        ),
    )(x, w1_k, b1_k, w2_k, b2_k)

    return out


def _reference_f32(x, w1, b1, w2, b2):
    h = jnp.maximum(x @ w1 + b1, 0.0)
    return h @ w2 + b2


def _reference_bf16(x, w1, b1, w2, b2):
    # Same cast points as the kernel (bf16 MXU operands, f32 accumulate/epilogue).
    h = jnp.dot(x.astype(jnp.bfloat16), w1.astype(jnp.bfloat16),
                preferred_element_type=jnp.float32)
    h = jnp.maximum(h + b1, 0.0)
    out = jnp.dot(h.astype(jnp.bfloat16), w2.astype(jnp.bfloat16),
                  preferred_element_type=jnp.float32)
    return out + b2


if __name__ == "__main__":
    # Small shapes consistent with the module:
    # x -> dpp_layer(hidden_size_dpp) -> relu -> fc_out(output_size).
    batch = 8
    in_features = 32
    hidden_size_dpp = 32
    output_size = 16

    key = jax.random.PRNGKey(0)
    k_x, k_w1, k_b1, k_w2, k_b2 = jax.random.split(key, 5)

    x = jax.random.normal(k_x, (batch, in_features), dtype=jnp.float32)

    # Deterministic parameter init (uniform, torch.nn.Linear-style bounds).
    bound1 = 1.0 / jnp.sqrt(in_features)
    w1 = jax.random.uniform(k_w1, (in_features, hidden_size_dpp),
                            minval=-bound1, maxval=bound1, dtype=jnp.float32)
    b1 = jax.random.uniform(k_b1, (1, hidden_size_dpp),
                            minval=-bound1, maxval=bound1, dtype=jnp.float32)

    bound2 = 1.0 / jnp.sqrt(hidden_size_dpp)
    w2 = jax.random.uniform(k_w2, (hidden_size_dpp, output_size),
                            minval=-bound2, maxval=bound2, dtype=jnp.float32)
    b2 = jax.random.uniform(k_b2, (1, output_size),
                            minval=-bound2, maxval=bound2, dtype=jnp.float32)

    out = jax.block_until_ready(dpp_model_forward(x, w1, b1, w2, b2))

    ref_f32 = _reference_f32(x, w1, b1, w2, b2)
    ref_bf16 = _reference_bf16(x, w1, b1, w2, b2)

    assert out.shape == (batch, output_size), out.shape
    # Tight check against a reference with identical bf16 cast points.
    assert jnp.allclose(out, ref_bf16, atol=1e-2, rtol=1e-2), \
        "mismatch vs bf16-faithful reference"
    # Loose check against the full-f32 torch-equivalent math (bf16 rounding).
    assert jnp.allclose(out, ref_f32, atol=5e-2, rtol=5e-2), \
        "mismatch vs f32 reference"

    print("KERNEL_OK")
</pallas_src>

<mosaic_0001>
module attributes {stable_mosaic.version = 11 : i64} {
  func.func @_dpp_model_kernel(%arg0: i32, %arg1: memref<8x32xf32, #tpu.memory_space<vmem>>, %arg2: memref<32x32xbf16, #tpu.memory_space<vmem>>, %arg3: memref<1x32xf32, #tpu.memory_space<vmem>>, %arg4: memref<32x16xbf16, #tpu.memory_space<vmem>>, %arg5: memref<1x16xf32, #tpu.memory_space<vmem>>, %arg6: memref<8x16xf32, #tpu.memory_space<vmem>>) attributes {dimension_semantics = [#tpu.dimension_semantics<parallel>], iteration_bounds = array<i64: 1>, scalar_prefetch = 0 : i64, scratch_operands = 0 : i64, tpu.core_type = #tpu.core_type<tc>, window_params = [{transform_indices = @transform_0, window_bounds = array<i64: 8, 32>}, {pipeline_mode = #tpu.pipeline_mode<synchronous>, transform_indices = @transform_1, window_bounds = array<i64: 32, 32>}, {pipeline_mode = #tpu.pipeline_mode<synchronous>, transform_indices = @transform_2, window_bounds = array<i64: 1, 32>}, {pipeline_mode = #tpu.pipeline_mode<synchronous>, transform_indices = @transform_3, window_bounds = array<i64: 32, 16>}, {pipeline_mode = #tpu.pipeline_mode<synchronous>, transform_indices = @transform_4, window_bounds = array<i64: 1, 16>}, {transform_indices = @transform_5, window_bounds = array<i64: 8, 16>}]} {
    %c0 = arith.constant 0 : index
    %c0_0 = arith.constant 0 : index
    %0 = vector.load %arg1[%c0, %c0_0] : memref<8x32xf32, #tpu.memory_space<vmem>>, vector<8x32xf32>
    %1 = arith.truncf %0 : vector<8x32xf32> to vector<8x32xbf16>
    %c0_1 = arith.constant 0 : index
    %c0_2 = arith.constant 0 : index
    %2 = vector.load %arg2[%c0_1, %c0_2] : memref<32x32xbf16, #tpu.memory_space<vmem>>, vector<32x32xbf16>
    %cst = arith.constant dense<0.000000e+00> : vector<8x32xf32>
    %3 = tpu.matmul %1, %2, %cst {dimension_numbers = #tpu.dot_dimension_numbers<[1], [0], [0], [1], [0, 0, 1, 1], [], []>} : vector<8x32xbf16>, vector<32x32xbf16>, vector<8x32xf32> -> vector<8x32xf32>
    %c0_3 = arith.constant 0 : index
    %c0_4 = arith.constant 0 : index
    %4 = vector.load %arg3[%c0_3, %c0_4] : memref<1x32xf32, #tpu.memory_space<vmem>>, vector<1x32xf32>
    %5 = vector.broadcast %4 : vector<1x32xf32> to vector<8x32xf32>
    %6 = arith.addf %3, %5 : vector<8x32xf32>
    %cst_5 = arith.constant 0.000000e+00 : f32
    %7 = vector.broadcast %cst_5 : f32 to vector<8x32xf32>
    %8 = arith.maximumf %6, %7 : vector<8x32xf32>
    %9 = arith.truncf %8 : vector<8x32xf32> to vector<8x32xbf16>
    %c0_6 = arith.constant 0 : index
    %c0_7 = arith.constant 0 : index
    %10 = vector.load %arg4[%c0_6, %c0_7] : memref<32x16xbf16, #tpu.memory_space<vmem>>, vector<32x16xbf16>
    %cst_8 = arith.constant dense<0.000000e+00> : vector<8x16xf32>
    %11 = tpu.matmul %9, %10, %cst_8 {dimension_numbers = #tpu.dot_dimension_numbers<[1], [0], [0], [1], [0, 0, 1, 1], [], []>} : vector<8x32xbf16>, vector<32x16xbf16>, vector<8x16xf32> -> vector<8x16xf32>
    %c0_9 = arith.constant 0 : index
    %c0_10 = arith.constant 0 : index
    %12 = vector.load %arg5[%c0_9, %c0_10] : memref<1x16xf32, #tpu.memory_space<vmem>>, vector<1x16xf32>
    %13 = vector.broadcast %12 : vector<1x16xf32> to vector<8x16xf32>
    %14 = arith.addf %11, %13 : vector<8x16xf32>
    %c0_11 = arith.constant 0 : index
    %c0_12 = arith.constant 0 : index
    %15 = vector.load %arg6[%c0_11, %c0_12] : memref<8x16xf32, #tpu.memory_space<vmem>>, vector<8x16xf32>
    tpu.vector_store %arg6[%c0_11, %c0_12], %14 {strides = array<i32>} : memref<8x16xf32, #tpu.memory_space<vmem>>, vector<8x16xf32>,
    return
  }
  func.func @transform_0(%arg0: i32) -> (i32, i32) {
    %c0_i32 = arith.constant 0 : i32
    %c0_i32_0 = arith.constant 0 : i32
    return %arg0, %c0_i32 : i32, i32
  }
  func.func @transform_1(%arg0: i32) -> (i32, i32) {
    %c0_i32 = arith.constant 0 : i32
    %c0_i32_0 = arith.constant 0 : i32
    %c0_i32_1 = arith.constant 0 : i32
    return %c0_i32, %c0_i32_0 : i32, i32
  }
  func.func @transform_2(%arg0: i32) -> (i32, i32) {
    %c0_i32 = arith.constant 0 : i32
    %c0_i32_0 = arith.constant 0 : i32
    %c0_i32_1 = arith.constant 0 : i32
    return %c0_i32, %c0_i32_0 : i32, i32
  }
  func.func @transform_3(%arg0: i32) -> (i32, i32) {
    %c0_i32 = arith.constant 0 : i32
    %c0_i32_0 = arith.constant 0 : i32
    %c0_i32_1 = arith.constant 0 : i32
    return %c0_i32, %c0_i32_0 : i32, i32
  }
  func.func @transform_4(%arg0: i32) -> (i32, i32) {
    %c0_i32 = arith.constant 0 : i32
    %c0_i32_0 = arith.constant 0 : i32
    %c0_i32_1 = arith.constant 0 : i32
    return %c0_i32, %c0_i32_0 : i32, i32
  }
  func.func @transform_5(%arg0: i32) -> (i32, i32) {
    %c0_i32 = arith.constant 0 : i32
    %c0_i32_0 = arith.constant 0 : i32
    return %arg0, %c0_i32 : i32, i32
  }
}

</mosaic_0001>

<llo_original>
// kernel: tpu_custom_call.1
$region0: #{tpu_custom_call.1}
  #allocation0 [shape = 'u32[]', space=smem, size = 0x4, offset = 0x4, fixed_abs, tag = 'smem constant byte address 0x4 - core index']
  #allocation1 [shape = 'u32[144,128]{1,0:T(1,128)}', space=vmem, size = 0x12000, scoped, tag = 'internal scratch']
  %s0 = inlined_call_operand.vmem [shape: f32[8,32], index: 0, kind: input, shape index: {}]
  %s1 = inlined_call_operand.vmem [shape: bf16[32,32], index: 1, kind: input, shape index: {}]
  %s2 = inlined_call_operand.vmem [shape: f32[1,32], index: 2, kind: input, shape index: {}]
  %s3 = inlined_call_operand.vmem [shape: bf16[32,16], index: 3, kind: input, shape index: {}]
  %s4 = inlined_call_operand.vmem [shape: f32[1,16], index: 4, kind: input, shape index: {}]
  %s5 = inlined_call_operand.hbm [shape: f32[8,16], index: 5, kind: output, shape index: {}]
  %s6 = sld [smem:[#allocation0]]
  $region30: #{tpu_custom_call.1} parent=0
    _
  %s8 = ssub.s32 1, %s6
  %s9 = scalar_select 0, %s8, %s6
  $region1: #{tpu_custom_call.1} parent=0
    #allocation2 [shape = 'u8[4096]{0}', space=vmem, size = 0x1000, scoped, tag = 'output window, operand 0, single buffered']
    #allocation3 [shape = 's32[1]{0}', space=sflag, size = 0x4, scoped, tag = 'scoped memory for tpu_custom_call.1']
    %10 = vsyncpa [#allocation3], 0
    // Predicated region
    $region2: #{tpu_custom_call.1} parent=1 // pred_check
      _
    $region3: #{tpu_custom_call.1} parent=1 // pred_check_branch
      %12 = sbr.rel (0) target = $region5
    $region4: #{tpu_custom_call.1} parent=1 // pred_region
      _
    $region5: #{tpu_custom_call.1} parent=1 // pred_fallthru
      _
    // Predicated region
    $region6: #{tpu_custom_call.1} parent=1 // pred_check
      _
    $region7: #{tpu_custom_call.1} parent=1 // pred_check_branch
      %14 = sbr.rel (0) target = $region9
    $region8: #{tpu_custom_call.1} parent=1 // pred_region
      _
    $region9: #{tpu_custom_call.1} parent=1 // pred_fallthru
      _
    // Predicated region
    $region10: #{tpu_custom_call.1} parent=1 // pred_check
      _
    $region11: #{tpu_custom_call.1} parent=1 // pred_check_branch
      %16 = sbr.rel (0) target = $region13
    $region12: #{tpu_custom_call.1} parent=1 // pred_region
      _
    $region13: #{tpu_custom_call.1} parent=1 // pred_fallthru
      _
    // Predicated region
    $region14: #{tpu_custom_call.1} parent=1 // pred_check
      _
    $region15: #{tpu_custom_call.1} parent=1 // pred_check_branch
      %18 = sbr.rel (0) target = $region17
    $region16: #{tpu_custom_call.1} parent=1 // pred_region
      _
    $region17: #{tpu_custom_call.1} parent=1 // pred_fallthru
      _
    // Predicated region
    $region18: #{tpu_custom_call.1} parent=1 // pred_check
      _
    $region19: #{tpu_custom_call.1} parent=1 // pred_check_branch
      %20 = sbr.rel (0) target = $region21
    $region20: #{tpu_custom_call.1} parent=1 // pred_region
      _
    $region21: #{tpu_custom_call.1} parent=1 // pred_fallthru
      _
    %v22 = vld [vmem:[%s0] sm:$0xff]
    %v23 = vpack.c.bf16 %v22, %v22
    %v24 = vld [vmem:[%s1] sm:$0xf]
    %v25 = vld [vmem:[%s1 + $0x4] sm:$0xf]
    %v26 = vld [vmem:[%s1 + $0x8] sm:$0xf]
    %v27 = vld [vmem:[%s1 + $0xc] sm:$0xf]
    %v28 = vld [vmem:[%s2] sm:$0x1]
    %v30 = vlaneseq
    %v31 = vshrl.u32 %v30, 7
    %v32 = vsub.s32 0, %v31
    %v33 = vrot.slane %v28, %v32
    %v39 = vunpack.c.l.b16 %v24
    %v40 = vunpack.c.l.b16 %v25
    %v41 = vunpack.c.l.b16 %v26
    %v42 = vunpack.c.l.b16 %v27
    %v43 = vpack.c.b16 %v40, %v39
    %v44 = vpack.c.b16 %v42, %v41
    %vm47 = vcmask 261120
    %v49 = vsel %vm47, %v23, 0
    %51 = vmatprep.subr.bf16.mxu0 0
    %52 = vmatpush1.bf16.msra.mxu0 %v43
    %53 = vmatprep.subr.bf16.mxu0 0
    %54 = vmatpush1.bf16.msra.mxu0 %v44
    %55 = vmatprep.subr.bf16.mxu0 0
    %56 = vmatpush1.bf16.msra.mxu0 0
    %57 = vmatprep.subr.bf16.mxu0 0
    %58 = vmatpush1.bf16.msra.mxu0 0
    %59 = vmatprep.subr.bf16.mxu0 0
    %60 = vmatpush1.bf16.msra.mxu0 0
    %61 = vmatprep.subr.bf16.mxu0 0
    %62 = vmatpush1.bf16.msra.mxu0 0
    %63 = vmatprep.subr.bf16.mxu0 0
    %64 = vmatpush1.bf16.msra.mxu0 0
    %65 = vmatprep.subr.bf16.mxu0 0
    %66 = vmatpush1.bf16.msra.mxu0 0
    %67 = vmatprep.subr.bf16.mxu0 0
    %68 = vmatpush1.bf16.msra.mxu0 0
    %69 = vmatprep.subr.bf16.mxu0 0
    %70 = vmatpush1.bf16.msra.mxu0 0
    %71 = vmatprep.subr.bf16.mxu0 0
    %72 = vmatpush1.bf16.msra.mxu0 0
    %73 = vmatprep.subr.bf16.mxu0 0
    %74 = vmatpush1.bf16.msra.mxu0 0
    %75 = vmatprep.subr.bf16.mxu0 0
    %76 = vmatpush1.bf16.msra.mxu0 0
    %77 = vmatprep.subr.bf16.mxu0 0
    %78 = vmatpush1.bf16.msra.mxu0 0
    %79 = vmatprep.subr.bf16.mxu0 0
    %80 = vmatpush1.bf16.msra.mxu0 0
    %81 = vmatprep.subr.bf16.mxu0 0
    %82 = vmatpush1.bf16.msra.mxu0 0
    %83 = vmatprep.mubr.bf16.mxu0 0
    %84 = vmatmul.mubr.bf16.gmra.mrb[0].mxu0 %v49
    %v85 = vpop.f32.mrb[0].mxu0
    %v86 = vadd.f32 %v33, %v85
    %v87 = vpop.f32.mrb[0].mxu0
    %v88 = vpop.f32.mrb[0].mxu0
    %v89 = vpop.f32.mrb[0].mxu0
    %90 = vdwg.mxu0
    %v91 = vmax.f32 %v86, 0.0
    %v92 = vpack.c.bf16 %v91, %v91
    %v93 = vld [vmem:[%s3] sm:$0xf]
    %v94 = vld [vmem:[%s3 + $0x4] sm:$0xf]
    %v95 = vld [vmem:[%s3 + $0x8] sm:$0xf]
    %v96 = vld [vmem:[%s3 + $0xc] sm:$0xf]
    %v97 = vld [vmem:[%s4] sm:$0x1]
    %v99 = vlaneseq
    %v100 = vshrl.u32 %v99, 7
    %v101 = vsub.s32 0, %v100
    %v102 = vrot.slane %v97, %v101
    %v108 = vunpack.c.l.b16 %v93
    %v109 = vunpack.c.l.b16 %v94
    %v110 = vunpack.c.l.b16 %v95
    %v111 = vunpack.c.l.b16 %v96
    %v112 = vpack.c.b16 %v109, %v108
    %v113 = vpack.c.b16 %v111, %v110
    %v117 = vsel %vm47, %v92, 0
    %119 = vmatprep.subr.bf16.mxu0 0
    %120 = vmatpush1.bf16.msra.mxu0 %v112
    %121 = vmatprep.subr.bf16.mxu0 0
    %122 = vmatpush1.bf16.msra.mxu0 %v113
    %123 = vmatprep.subr.bf16.mxu0 0
    %124 = vmatpush1.bf16.msra.mxu0 0
    %125 = vmatprep.subr.bf16.mxu0 0
    %126 = vmatpush1.bf16.msra.mxu0 0
    %127 = vmatprep.subr.bf16.mxu0 0
    %128 = vmatpush1.bf16.msra.mxu0 0
    %129 = vmatprep.subr.bf16.mxu0 0
    %130 = vmatpush1.bf16.msra.mxu0 0
    %131 = vmatprep.subr.bf16.mxu0 0
    %132 = vmatpush1.bf16.msra.mxu0 0
    %133 = vmatprep.subr.bf16.mxu0 0
    %134 = vmatpush1.bf16.msra.mxu0 0
    %135 = vmatprep.subr.bf16.mxu0 0
    %136 = vmatpush1.bf16.msra.mxu0 0
    %137 = vmatprep.subr.bf16.mxu0 0
    %138 = vmatpush1.bf16.msra.mxu0 0
    %139 = vmatprep.subr.bf16.mxu0 0
    %140 = vmatpush1.bf16.msra.mxu0 0
    %141 = vmatprep.subr.bf16.mxu0 0
    %142 = vmatpush1.bf16.msra.mxu0 0
    %143 = vmatprep.subr.bf16.mxu0 0
    %144 = vmatpush1.bf16.msra.mxu0 0
    %145 = vmatprep.subr.bf16.mxu0 0
    %146 = vmatpush1.bf16.msra.mxu0 0
    %147 = vmatprep.subr.bf16.mxu0 0
    %148 = vmatpush1.bf16.msra.mxu0 0
    %149 = vmatprep.subr.bf16.mxu0 0
    %150 = vmatpush1.bf16.msra.mxu0 0
    %151 = vmatprep.mubr.bf16.mxu0 0
    %152 = vmatmul.mubr.bf16.gmra.mrb[0].mxu0 %v117
    %v153 = vpop.f32.mrb[0].mxu0
    %v154 = vadd.f32 %v102, %v153
    %v155 = vpop.f32.mrb[0].mxu0
    %v156 = vpop.f32.mrb[0].mxu0
    %v157 = vpop.f32.mrb[0].mxu0
    %158 = vdwg.mxu0
    %vm159 = vcmask 130048
    %160 = vst.msk [vmem:[#allocation2] sm:$0xff] %vm159, %v154
    // Predicated region
    $region22: #{tpu_custom_call.1} parent=1 // pred_check
      _
    $region23: #{tpu_custom_call.1} parent=1 // pred_check_branch
      %162 = sbr.rel (0) target = $region25
    $region24: #{tpu_custom_call.1} parent=1 // pred_region
      %s164 = ssub.s32 128, 128
      %165 = vsyncadd [#allocation3], %s164
      %s167 = sshll.u32 [#allocation2], 4
      %s168 = int_to_ptr.vmem [resolvable:$true] %s167
      %170 = dma.vmem_to_hbm [thread:$0]  %s168, 128, %s5, [#allocation3]
    $region25: #{tpu_custom_call.1} parent=1 // pred_fallthru
      _
    // Predicated region
    $region26: #{tpu_custom_call.1} parent=1 // pred_check
      _
    $region27: #{tpu_custom_call.1} parent=1 // pred_check_branch
      %172 = sbr.rel (0) target = $region29
    $region28: #{tpu_custom_call.1} parent=1 // pred_region
      %173 = dma.done [#allocation3], 128
    $region29: #{tpu_custom_call.1} parent=1 // pred_fallthru
      _
    %174 = vsyncpa [#allocation3], 1

</llo_original>
